<compile_context>
chip_gen: v6e
topology: v6e:2x2x1
jax: 0.10.0
libtpu: 0.0.40
codegen_flags: <defaults>
</compile_context>

<pallas_src>
import functools

import jax
import jax.numpy as jnp
from jax.experimental import pallas as pl
from jax.experimental.pallas import tpu as pltpu


def _round_up(x, m):
    return (x + m - 1) // m * m


def _num_actor_kernel(out_size, x_ref, w1_ref, b1_ref, wh_ref, bh_ref, out_ref):
    # hidden = tanh(x @ W1 + b1)   -- bf16 MXU matmul, f32 accumulate + VPU/EUP tanh
    h = jnp.tanh(
        jnp.dot(x_ref[...], w1_ref[...], preferred_element_type=jnp.float32)
        + b1_ref[...]
    )
    # fused heads: z = h @ [Wmu | Wsig | 0-pad] + [bmu | bsig | 0]  -> [TB, 128]
    z = (
        jnp.dot(h.astype(wh_ref.dtype), wh_ref[...],
                preferred_element_type=jnp.float32)
        + bh_ref[...]
    )
    # Column mask selects the activation per lane: first `out_size` lanes are
    # the mu head (tanh), next `out_size` lanes are the sigma head (softplus).
    # Whole-vreg ops; padded lanes are discarded in the wrapper.
    col = jax.lax.broadcasted_iota(jnp.int32, z.shape, 1)
    out_ref[...] = jnp.where(col < out_size, jnp.tanh(z), jnp.logaddexp(z, 0.0))


def num_actor_forward(x, w1, b1, wmu, bmu, wsig, bsig, *,
                      use_bf16=True, tb=128):
    """x: [B, input_size]; weights pre-transposed ([in, out]); biases [1, out].
    Returns (mm, ss), each [B, output_size] float32."""
    B, in_size = x.shape
    hidden = w1.shape[1]
    out_size = wmu.shape[1]
    head_pad = _round_up(2 * out_size, 128)      # lane-dense head width

    # Fuse the two heads into one weight/bias, zero-padded to 128 lanes.
    w_heads = jnp.concatenate([wmu, wsig], axis=1)
    b_heads = jnp.concatenate([bmu, bsig], axis=1)
    if head_pad != 2 * out_size:
        w_heads = jnp.pad(w_heads, ((0, 0), (0, head_pad - 2 * out_size)))
        b_heads = jnp.pad(b_heads, ((0, 0), (0, head_pad - 2 * out_size)))

    # Batch tiling: at least 8 rows (f32 sublane), up to `tb` rows per step.
    tb_eff = min(tb, _round_up(max(B, 8), 8))
    b_pad = _round_up(B, tb_eff)
    if b_pad != B:
        x = jnp.pad(x, ((0, b_pad - B), (0, 0)))

    mm_dtype = jnp.bfloat16 if use_bf16 else x.dtype
    x_k = x.astype(mm_dtype)
    w1_k = w1.astype(mm_dtype)
    wh_k = w_heads.astype(mm_dtype)
    b1_k = b1.astype(jnp.float32)
    bh_k = b_heads.astype(jnp.float32)

    grid = (b_pad // tb_eff,)
    kernel = functools.partial(_num_actor_kernel, out_size)

    itemsize = jnp.dtype(mm_dtype).itemsize
    cost = pl.CostEstimate(
        flops=2 * b_pad * (in_size * hidden + hidden * head_pad),
        transcendentals=b_pad * (hidden + 2 * head_pad),
        bytes_accessed=(x_k.size * itemsize
                        + w1_k.size * itemsize + wh_k.size * itemsize
                        + b1_k.size * 4 + bh_k.size * 4
                        + b_pad * head_pad * 4),
    )

    out = pl.pallas_call(
        kernel,
        out_shape=jax.ShapeDtypeStruct((b_pad, head_pad), jnp.float32),
        grid=grid,
        in_specs=[
            # x tiles stream with the grid; weights/biases stay VMEM-resident.
            pl.BlockSpec((tb_eff, in_size), lambda i: (i, 0)),
            pl.BlockSpec(w1_k.shape, lambda i: (0, 0)),
            pl.BlockSpec(b1_k.shape, lambda i: (0, 0)),
            pl.BlockSpec(wh_k.shape, lambda i: (0, 0)),
            pl.BlockSpec(bh_k.shape, lambda i: (0, 0)),
        ],
        out_specs=pl.BlockSpec((tb_eff, head_pad), lambda i: (i, 0)),
        compiler_params=pltpu.CompilerParams(
            dimension_semantics=("parallel",)),
        cost_estimate=cost,
    )(x_k, w1_k, b1_k, wh_k, bh_k)

    mm = out[:B, :out_size]
    ss = out[:B, out_size:2 * out_size]
    return mm, ss


def init_linear(key, in_features, out_features):
    """PyTorch-style init U(-1/sqrt(fan_in), 1/sqrt(fan_in)).
    Returns W as [in_features, out_features] (pre-transposed) and b as
    [1, out_features]."""
    kw, kb = jax.random.split(key)
    bound = 1.0 / jnp.sqrt(jnp.float32(in_features))
    w = jax.random.uniform(kw, (in_features, out_features),
                           minval=-bound, maxval=bound, dtype=jnp.float32)
    b = jax.random.uniform(kb, (1, out_features),
                           minval=-bound, maxval=bound, dtype=jnp.float32)
    return w, b


def reference_forward(x, w1, b1, wmu, bmu, wsig, bsig, use_bf16=True):
    """Pure-JAX reference replicating the kernel's bf16-input matmuls."""
    if use_bf16:
        c = lambda a: a.astype(jnp.bfloat16).astype(jnp.float32)
        x, w1, wmu, wsig = c(x), c(w1), c(wmu), c(wsig)
    h = jnp.tanh(x @ w1 + b1)
    if use_bf16:
        h = h.astype(jnp.bfloat16).astype(jnp.float32)
    mm = jnp.tanh(h @ wmu + bmu)
    ss = jax.nn.softplus(h @ wsig + bsig)
    return mm, ss


if __name__ == "__main__":
    # Small shapes consistent with NumActor(input_size, output_size, hidden=128)
    batch = 2
    input_size = 32
    hidden_size = 128
    output_size = 8

    key = jax.random.PRNGKey(0)
    kx, k1, k2, k3 = jax.random.split(key, 4)

    x = jax.random.normal(kx, (batch, input_size), dtype=jnp.float32)
    w1, b1 = init_linear(k1, input_size, hidden_size)
    wmu, bmu = init_linear(k2, hidden_size, output_size)
    wsig, bsig = init_linear(k3, hidden_size, output_size)

    mm, ss = num_actor_forward(x, w1, b1, wmu, bmu, wsig, bsig, use_bf16=True)
    jax.block_until_ready((mm, ss))

    mm_ref, ss_ref = reference_forward(x, w1, b1, wmu, bmu, wsig, bsig,
                                       use_bf16=True)
    assert mm.shape == (batch, output_size) and ss.shape == (batch, output_size)
    assert jnp.allclose(mm, mm_ref, atol=1e-3, rtol=1e-3)
    assert jnp.allclose(ss, ss_ref, atol=1e-3, rtol=1e-3)
    assert bool(jnp.all(ss > 0))  # softplus output is strictly positive

    print("KERNEL_OK")
</pallas_src>

<mosaic_0001>
module attributes {stable_mosaic.version = 11 : i64} {
  func.func @_num_actor_kernel(%arg0: i32, %arg1: memref<8x32xbf16, #tpu.memory_space<vmem>>, %arg2: memref<32x128xbf16, #tpu.memory_space<vmem>>, %arg3: memref<1x128xf32, #tpu.memory_space<vmem>>, %arg4: memref<128x128xbf16, #tpu.memory_space<vmem>>, %arg5: memref<1x128xf32, #tpu.memory_space<vmem>>, %arg6: memref<8x128xf32, #tpu.memory_space<vmem>>) attributes {dimension_semantics = [#tpu.dimension_semantics<parallel>], iteration_bounds = array<i64: 1>, scalar_prefetch = 0 : i64, scratch_operands = 0 : i64, tpu.core_type = #tpu.core_type<tc>, window_params = [{transform_indices = @transform_0, window_bounds = array<i64: 8, 32>}, {pipeline_mode = #tpu.pipeline_mode<synchronous>, transform_indices = @transform_1, window_bounds = array<i64: 32, 128>}, {pipeline_mode = #tpu.pipeline_mode<synchronous>, transform_indices = @transform_2, window_bounds = array<i64: 1, 128>}, {pipeline_mode = #tpu.pipeline_mode<synchronous>, transform_indices = @transform_3, window_bounds = array<i64: 128, 128>}, {pipeline_mode = #tpu.pipeline_mode<synchronous>, transform_indices = @transform_4, window_bounds = array<i64: 1, 128>}, {transform_indices = @transform_5, window_bounds = array<i64: 8, 128>}]} {
    %c0 = arith.constant 0 : index
    %c0_0 = arith.constant 0 : index
    %0 = vector.load %arg1[%c0, %c0_0] : memref<8x32xbf16, #tpu.memory_space<vmem>>, vector<8x32xbf16>
    %c0_1 = arith.constant 0 : index
    %c0_2 = arith.constant 0 : index
    %1 = vector.load %arg2[%c0_1, %c0_2] : memref<32x128xbf16, #tpu.memory_space<vmem>>, vector<32x128xbf16>
    %cst = arith.constant dense<0.000000e+00> : vector<8x128xf32>
    %2 = tpu.matmul %0, %1, %cst {dimension_numbers = #tpu.dot_dimension_numbers<[1], [0], [0], [1], [0, 0, 1, 1], [], []>} : vector<8x32xbf16>, vector<32x128xbf16>, vector<8x128xf32> -> vector<8x128xf32>
    %c0_3 = arith.constant 0 : index
    %c0_4 = arith.constant 0 : index
    %3 = vector.load %arg3[%c0_3, %c0_4] : memref<1x128xf32, #tpu.memory_space<vmem>>, vector<1x128xf32>
    %4 = vector.broadcast %3 : vector<1x128xf32> to vector<8x128xf32>
    %5 = arith.addf %2, %4 : vector<8x128xf32>
    %6 = math.tanh %5 : vector<8x128xf32>
    %7 = arith.truncf %6 : vector<8x128xf32> to vector<8x128xbf16>
    %c0_5 = arith.constant 0 : index
    %c0_6 = arith.constant 0 : index
    %8 = vector.load %arg4[%c0_5, %c0_6] : memref<128x128xbf16, #tpu.memory_space<vmem>>, vector<128x128xbf16>
    %cst_7 = arith.constant dense<0.000000e+00> : vector<8x128xf32>
    %9 = tpu.matmul %7, %8, %cst_7 {dimension_numbers = #tpu.dot_dimension_numbers<[1], [0], [0], [1], [0, 0, 1, 1], [], []>} : vector<8x128xbf16>, vector<128x128xbf16>, vector<8x128xf32> -> vector<8x128xf32>
    %c0_8 = arith.constant 0 : index
    %c0_9 = arith.constant 0 : index
    %10 = vector.load %arg5[%c0_8, %c0_9] : memref<1x128xf32, #tpu.memory_space<vmem>>, vector<1x128xf32>
    %11 = vector.broadcast %10 : vector<1x128xf32> to vector<8x128xf32>
    %12 = arith.addf %9, %11 : vector<8x128xf32>
    %13 = tpu.iota {dimensions = array<i32: 1>} : vector<8x128xi32>
    %c8_i32 = arith.constant 8 : i32
    %14 = vector.broadcast %c8_i32 : i32 to vector<8x128xi32>
    %15 = arith.cmpi slt, %13, %14 : vector<8x128xi32>
    %16 = math.tanh %12 : vector<8x128xf32>
    %cst_10 = arith.constant 0.000000e+00 : f32
    %17 = vector.broadcast %cst_10 : f32 to vector<8x128xf32>
    %18 = arith.maximumf %12, %17 : vector<8x128xf32>
    %19 = vector.broadcast %cst_10 : f32 to vector<8x128xf32>
    %20 = arith.subf %12, %19 : vector<8x128xf32>
    %21 = arith.cmpf one, %20, %20 : vector<8x128xf32>
    %22 = vector.broadcast %cst_10 : f32 to vector<8x128xf32>
    %23 = arith.addf %12, %22 : vector<8x128xf32>
    %24 = math.absf %20 : vector<8x128xf32>
    %cst_11 = arith.constant 0.000000e+00 : f32
    %25 = vector.broadcast %cst_11 : f32 to vector<8x128xf32>
    %26 = arith.subf %25, %24 : vector<8x128xf32>
    %27 = math.exp %26 : vector<8x128xf32>
    %28 = math.log1p %27 : vector<8x128xf32>
    %29 = arith.addf %18, %28 : vector<8x128xf32>
    %30 = arith.select %21, %23, %29 : vector<8x128xi1>, vector<8x128xf32>
    %31 = arith.select %15, %16, %30 : vector<8x128xi1>, vector<8x128xf32>
    %c0_12 = arith.constant 0 : index
    %c0_13 = arith.constant 0 : index
    %32 = vector.load %arg6[%c0_12, %c0_13] : memref<8x128xf32, #tpu.memory_space<vmem>>, vector<8x128xf32>
    tpu.vector_store %arg6[%c0_12, %c0_13], %31 {strides = array<i32>} : memref<8x128xf32, #tpu.memory_space<vmem>>, vector<8x128xf32>,
    return
  }
  func.func @transform_0(%arg0: i32) -> (i32, i32) {
    %c0_i32 = arith.constant 0 : i32
    %c0_i32_0 = arith.constant 0 : i32
    return %arg0, %c0_i32 : i32, i32
  }
  func.func @transform_1(%arg0: i32) -> (i32, i32) {
    %c0_i32 = arith.constant 0 : i32
    %c0_i32_0 = arith.constant 0 : i32
    %c0_i32_1 = arith.constant 0 : i32
    return %c0_i32, %c0_i32_0 : i32, i32
  }
  func.func @transform_2(%arg0: i32) -> (i32, i32) {
    %c0_i32 = arith.constant 0 : i32
    %c0_i32_0 = arith.constant 0 : i32
    %c0_i32_1 = arith.constant 0 : i32
    return %c0_i32, %c0_i32_0 : i32, i32
  }
  func.func @transform_3(%arg0: i32) -> (i32, i32) {
    %c0_i32 = arith.constant 0 : i32
    %c0_i32_0 = arith.constant 0 : i32
    %c0_i32_1 = arith.constant 0 : i32
    return %c0_i32, %c0_i32_0 : i32, i32
  }
  func.func @transform_4(%arg0: i32) -> (i32, i32) {
    %c0_i32 = arith.constant 0 : i32
    %c0_i32_0 = arith.constant 0 : i32
    %c0_i32_1 = arith.constant 0 : i32
    return %c0_i32, %c0_i32_0 : i32, i32
  }
  func.func @transform_5(%arg0: i32) -> (i32, i32) {
    %c0_i32 = arith.constant 0 : i32
    %c0_i32_0 = arith.constant 0 : i32
    return %arg0, %c0_i32 : i32, i32
  }
}

</mosaic_0001>

<llo_original>
// kernel: tpu_custom_call.1
$region0: #{tpu_custom_call.1}
  #allocation0 [shape = 'u32[]', space=smem, size = 0x4, offset = 0x4, fixed_abs, tag = 'smem constant byte address 0x4 - core index']
  #allocation1 [shape = 'u32[144,128]{1,0:T(1,128)}', space=vmem, size = 0x12000, scoped, tag = 'internal scratch']
  %s0 = inlined_call_operand.hbm [shape: bf16[8,32], index: 0, kind: input, shape index: {}]
  %s1 = inlined_call_operand.hbm [shape: bf16[32,128], index: 1, kind: input, shape index: {}]
  %s2 = inlined_call_operand.vmem [shape: f32[1,128], index: 2, kind: input, shape index: {}]
  %s3 = inlined_call_operand.hbm [shape: bf16[128,128], index: 3, kind: input, shape index: {}]
  %s4 = inlined_call_operand.vmem [shape: f32[1,128], index: 4, kind: input, shape index: {}]
  %s5 = inlined_call_operand.hbm [shape: f32[8,128], index: 5, kind: output, shape index: {}]
  %s6 = sld [smem:[#allocation0]]
  $region42: #{tpu_custom_call.1} parent=0
    _
  %s8 = ssub.s32 1, %s6
  %s9 = scalar_select 0, %s8, %s6
  $region1: #{tpu_custom_call.1} parent=0
    #allocation2 [shape = 'u8[2048]{0}', space=vmem, size = 0x800, scoped, tag = 'input window, operand 0, single buffered']
    #allocation3 [shape = 's32[1]{0}', space=sflag, size = 0x4, scoped, tag = 'scoped memory for tpu_custom_call.1']
    #allocation4 [shape = 's32[1]{0}', space=sflag, size = 0x4, scoped, tag = 'scoped memory for tpu_custom_call.1']
    #allocation5 [shape = 'u8[8192]{0}', space=vmem, size = 0x2000, scoped, tag = 'input window, operand 1, single buffered']
    #allocation6 [shape = 's32[1]{0}', space=sflag, size = 0x4, scoped, tag = 'scoped memory for tpu_custom_call.1']
    #allocation7 [shape = 'u8[32768]{0}', space=vmem, size = 0x8000, scoped, tag = 'input window, operand 3, single buffered']
    #allocation8 [shape = 'u8[4096]{0}', space=vmem, size = 0x1000, scoped, tag = 'output window, operand 0, single buffered']
    %10 = vsyncpa [#allocation3], 0
    %11 = vsyncpa [#allocation6], 0
    %12 = vsyncpa [#allocation4], 0
    // Predicated region
    $region2: #{tpu_custom_call.1} parent=1 // pred_check
      _
    $region3: #{tpu_custom_call.1} parent=1 // pred_check_branch
      %14 = sbr.rel (0) target = $region5
    $region4: #{tpu_custom_call.1} parent=1 // pred_region
      %s16 = ssub.s32 64, 64
      %17 = vsyncadd [#allocation3], %s16
      %s19 = sshll.u32 [#allocation2], 4
      %s20 = int_to_ptr.vmem [resolvable:$true] %s19
      %22 = dma.hbm_to_vmem [thread:$0]  %s0, 64, %s20, [#allocation3]
    $region5: #{tpu_custom_call.1} parent=1 // pred_fallthru
      _
    // Predicated region
    $region6: #{tpu_custom_call.1} parent=1 // pred_check
      _
    $region7: #{tpu_custom_call.1} parent=1 // pred_check_branch
      %24 = sbr.rel (0) target = $region9
    $region8: #{tpu_custom_call.1} parent=1 // pred_region
      %s26 = ssub.s32 256, 256
      %27 = vsyncadd [#allocation6], %s26
      %s28 = sshll.u32 [#allocation5], 4
      %s29 = int_to_ptr.vmem [resolvable:$true] %s28
      %34 = dma.hbm_to_vmem [thread:$0]  %s1, 256, %s29, [#allocation6], 64, 64, 4
    $region9: #{tpu_custom_call.1} parent=1 // pred_fallthru
      _
    // Predicated region
    $region10: #{tpu_custom_call.1} parent=1 // pred_check
      _
    $region11: #{tpu_custom_call.1} parent=1 // pred_check_branch
      %36 = sbr.rel (0) target = $region13
    $region12: #{tpu_custom_call.1} parent=1 // pred_region
      _
    $region13: #{tpu_custom_call.1} parent=1 // pred_fallthru
      _
    // Predicated region
    $region14: #{tpu_custom_call.1} parent=1 // pred_check
      _
    $region15: #{tpu_custom_call.1} parent=1 // pred_check_branch
      %38 = sbr.rel (0) target = $region17
    $region16: #{tpu_custom_call.1} parent=1 // pred_region
      %s40 = ssub.s32 1024, 1024
      %41 = vsyncadd [#allocation6], %s40
      %s42 = sshll.u32 [#allocation7], 4
      %s43 = int_to_ptr.vmem [resolvable:$true] %s42
      %48 = dma.hbm_to_vmem [thread:$0]  %s3, 1024, %s43, [#allocation6], 64, 64, 4
    $region17: #{tpu_custom_call.1} parent=1 // pred_fallthru
      _
    // Predicated region
    $region18: #{tpu_custom_call.1} parent=1 // pred_check
      _
    $region19: #{tpu_custom_call.1} parent=1 // pred_check_branch
      %50 = sbr.rel (0) target = $region21
    $region20: #{tpu_custom_call.1} parent=1 // pred_region
      _
    $region21: #{tpu_custom_call.1} parent=1 // pred_fallthru
      _
    // Predicated region
    $region22: #{tpu_custom_call.1} parent=1 // pred_check
      _
    $region23: #{tpu_custom_call.1} parent=1 // pred_check_branch
      %52 = sbr.rel (0) target = $region25
    $region24: #{tpu_custom_call.1} parent=1 // pred_region
      %53 = dma.done [#allocation3], 64
    $region25: #{tpu_custom_call.1} parent=1 // pred_fallthru
      _
    // Predicated region
    $region26: #{tpu_custom_call.1} parent=1 // pred_check
      _
    $region27: #{tpu_custom_call.1} parent=1 // pred_check_branch
      %55 = sbr.rel (0) target = $region29
    $region28: #{tpu_custom_call.1} parent=1 // pred_region
      %56 = dma.done [#allocation6], 256
    $region29: #{tpu_custom_call.1} parent=1 // pred_fallthru
      _
    // Predicated region
    $region30: #{tpu_custom_call.1} parent=1 // pred_check
      _
    $region31: #{tpu_custom_call.1} parent=1 // pred_check_branch
      %58 = sbr.rel (0) target = $region33
    $region32: #{tpu_custom_call.1} parent=1 // pred_region
      %59 = dma.done [#allocation6], 1024
    $region33: #{tpu_custom_call.1} parent=1 // pred_fallthru
      _
    %v61 = vld [vmem:[#allocation2] sm:$0xf]
    %v62 = vld [vmem:[#allocation5] sm:$0xf]
    %v63 = vld [vmem:[#allocation5 + $0x4] sm:$0xf]
    %v64 = vld [vmem:[#allocation5 + $0x8] sm:$0xf]
    %v65 = vld [vmem:[#allocation5 + $0xc] sm:$0xf]
    %v66 = vld [vmem:[%s2] sm:$0x1]
    %v68 = vlaneseq
    %v69 = vshrl.u32 %v68, 7
    %v70 = vsub.s32 0, %v69
    %v71 = vrot.slane %v66, %v70
    %v77 = vunpack.c.l.b16 %v62
    %v78 = vunpack.c.l.b16 %v63
    %v79 = vunpack.c.l.b16 %v64
    %v80 = vunpack.c.l.b16 %v65
    %v81 = vpack.c.b16 %v78, %v77
    %v82 = vpack.c.b16 %v80, %v79
    %vm85 = vcmask 261120
    %v87 = vsel %vm85, %v61, 0
    %89 = vmatprep.subr.bf16.mxu0 0
    %90 = vmatpush1.bf16.msra.mxu0 0
    %91 = vmatprep.subr.bf16.mxu0 0
    %92 = vmatpush1.bf16.msra.mxu0 0
    %93 = vmatprep.subr.bf16.mxu0 0
    %94 = vmatpush1.bf16.msra.mxu0 0
    %95 = vmatprep.subr.bf16.mxu0 0
    %96 = vmatpush1.bf16.msra.mxu0 0
    %97 = vmatprep.subr.bf16.mxu0 0
    %98 = vmatpush1.bf16.msra.mxu0 0
    %99 = vmatprep.subr.bf16.mxu0 0
    %100 = vmatpush1.bf16.msra.mxu0 0
    %101 = vmatprep.subr.bf16.mxu0 0
    %102 = vmatpush1.bf16.msra.mxu0 %v82
    %103 = vmatprep.subr.bf16.mxu0 0
    %104 = vmatpush1.bf16.msra.mxu0 %v81
    %105 = vmatprep.subr.bf16.mxu0 0
    %106 = vmatpush2.bf16.msra.mxu0 0
    %107 = vmatprep.subr.bf16.mxu0 0
    %108 = vmatpush2.bf16.msra.mxu0 0
    %109 = vmatprep.subr.bf16.mxu0 0
    %110 = vmatpush2.bf16.msra.mxu0 0
    %111 = vmatprep.subr.bf16.mxu0 0
    %112 = vmatpush2.bf16.msra.mxu0 0
    %113 = vmatprep.subr.bf16.mxu0 0
    %114 = vmatpush2.bf16.msra.mxu0 0
    %115 = vmatprep.subr.bf16.mxu0 0
    %116 = vmatpush2.bf16.msra.mxu0 0
    %117 = vmatprep.subr.bf16.mxu0 0
    %118 = vmatpush2.bf16.msra.mxu0 0
    %119 = vmatprep.subr.bf16.mxu0 0
    %120 = vmatpush2.bf16.msra.mxu0 0
    %121 = vmatprep.mubr.bf16.mxu0 0
    %122 = vmatmul.mubr.bf16.gmra.mxu0 %v87
    %v123 = vpop.f32.mrf.mxu0
    %v124 = vadd.f32 %v71, %v123
    %v125 = vpop.f32.mrf.mxu0
    %v126 = vpop.f32.mrf.mxu0
    %v127 = vpop.f32.mrf.mxu0
    %128 = vdwg.mxu0
    %v129 = vtanh.pop %v124
    %v130 = vpack.c.bf16 %v129, %v129
    %v131 = vld [vmem:[#allocation7] sm:$0xf]
    %v132 = vld [vmem:[#allocation7 + $0x4] sm:$0xf]
    %v133 = vld [vmem:[#allocation7 + $0x8] sm:$0xf]
    %v134 = vld [vmem:[#allocation7 + $0xc] sm:$0xf]
    %v135 = vld [vmem:[#allocation7 + $0x10] sm:$0xf]
    %v136 = vld [vmem:[#allocation7 + $0x14] sm:$0xf]
    %v137 = vld [vmem:[#allocation7 + $0x18] sm:$0xf]
    %v138 = vld [vmem:[#allocation7 + $0x1c] sm:$0xf]
    %v139 = vld [vmem:[#allocation7 + $0x20] sm:$0xf]
    %v140 = vld [vmem:[#allocation7 + $0x24] sm:$0xf]
    %v141 = vld [vmem:[#allocation7 + $0x28] sm:$0xf]
    %v142 = vld [vmem:[#allocation7 + $0x2c] sm:$0xf]
    %v143 = vld [vmem:[#allocation7 + $0x30] sm:$0xf]
    %v144 = vld [vmem:[#allocation7 + $0x34] sm:$0xf]
    %v145 = vld [vmem:[#allocation7 + $0x38] sm:$0xf]
    %v146 = vld [vmem:[#allocation7 + $0x3c] sm:$0xf]
    %v147 = vld [vmem:[%s4] sm:$0x1]
    %v149 = vlaneseq
    %v150 = vshrl.u32 %v149, 7
    %v151 = vsub.s32 0, %v150
    %v152 = vrot.slane %v147, %v151
    %v170 = vunpack.c.l.b16 %v131
    %v171 = vunpack.c.l.b16 %v132
    %v172 = vunpack.c.l.b16 %v133
    %v173 = vunpack.c.l.b16 %v134
    %v174 = vunpack.c.l.b16 %v135
    %v175 = vunpack.c.l.b16 %v136
    %v176 = vunpack.c.l.b16 %v137
    %v177 = vunpack.c.l.b16 %v138
    %v178 = vunpack.c.l.b16 %v139
    %v179 = vunpack.c.l.b16 %v140
    %v180 = vunpack.c.l.b16 %v141
    %v181 = vunpack.c.l.b16 %v142
    %v182 = vunpack.c.l.b16 %v143
    %v183 = vunpack.c.l.b16 %v144
    %v184 = vunpack.c.l.b16 %v145
    %v185 = vunpack.c.l.b16 %v146
    %v186 = vpack.c.b16 %v171, %v170
    %v187 = vpack.c.b16 %v173, %v172
    %v188 = vpack.c.b16 %v175, %v174
    %v189 = vpack.c.b16 %v177, %v176
    %v190 = vpack.c.b16 %v179, %v178
    %v191 = vpack.c.b16 %v181, %v180
    %v192 = vpack.c.b16 %v183, %v182
    %v193 = vpack.c.b16 %v185, %v184
    %202 = vmatprep.subr.bf16.mxu0 0
    %203 = vmatpush1.bf16.msra.mxu0 %v193
    %204 = vmatprep.subr.bf16.mxu0 0
    %205 = vmatpush1.bf16.msra.mxu0 %v192
    %206 = vmatprep.subr.bf16.mxu0 0
    %207 = vmatpush1.bf16.msra.mxu0 %v191
    %208 = vmatprep.subr.bf16.mxu0 0
    %209 = vmatpush1.bf16.msra.mxu0 %v190
    %210 = vmatprep.subr.bf16.mxu0 0
    %211 = vmatpush1.bf16.msra.mxu0 %v189
    %212 = vmatprep.subr.bf16.mxu0 0
    %213 = vmatpush1.bf16.msra.mxu0 %v188
    %214 = vmatprep.subr.bf16.mxu0 0
    %215 = vmatpush1.bf16.msra.mxu0 %v187
    %216 = vmatprep.subr.bf16.mxu0 0
    %217 = vmatpush1.bf16.msra.mxu0 %v186
    %218 = vmatprep.subr.bf16.mxu0 0
    %219 = vmatpush2.bf16.msra.mxu0 0
    %220 = vmatprep.subr.bf16.mxu0 0
    %221 = vmatpush2.bf16.msra.mxu0 0
    %222 = vmatprep.subr.bf16.mxu0 0
    %223 = vmatpush2.bf16.msra.mxu0 0
    %224 = vmatprep.subr.bf16.mxu0 0
    %225 = vmatpush2.bf16.msra.mxu0 0
    %226 = vmatprep.subr.bf16.mxu0 0
    %227 = vmatpush2.bf16.msra.mxu0 0
    %228 = vmatprep.subr.bf16.mxu0 0
    %229 = vmatpush2.bf16.msra.mxu0 0
    %230 = vmatprep.subr.bf16.mxu0 0
    %231 = vmatpush2.bf16.msra.mxu0 0
    %232 = vmatprep.subr.bf16.mxu0 0
    %233 = vmatpush2.bf16.msra.mxu0 0
    %234 = vmatprep.mubr.bf16.mxu0 0
    %235 = vmatmul.mubr.bf16.gmra.mxu0 %v130
    %v236 = vpop.f32.mrf.mxu0
    %v237 = vadd.f32 %v152, %v236
    %v238 = vpop.f32.mrf.mxu0
    %v239 = vpop.f32.mrf.mxu0
    %v240 = vpop.f32.mrf.mxu0
    %241 = vdwg.mxu0
    %v242 = vlaneseq
    %v243 = vand.u32 %v242, 127
    %vm244 = vcmp.lt.s32.totalorder %v243, 8
    %v245 = vtanh.pop %v237
    %v246 = vmax.f32 %v237, 0.0
    %vm247 = vcmp.ne.f32.partialorder %v237, %v237
    %v248 = vadd.f32 %v237, 0.0
    %v249 = vand.u32 2147483647, %v237
    %v250 = vsub.f32 0.0, %v249
    %v251 = vmul.f32 %v250, 1.442695
    %v252 = vpow.pop %v251
    %v253 = vadd.f32 %v252, 1.0
    %v254 = vlog2.pop %v253
    %v255 = vmul.f32 %v254, 0.6931472
    %v256 = vmul.f32 -0.5, %v252
    %v257 = vadd.f32 %v256, 1.0
    %v258 = vmul.f32 %v257, %v252
    %v259 = vand.u32 2147483647, %v252
    %vm260 = vcmp.lt.f32.partialorder %v259, 0.0004427343
    %v261 = vsel %vm260, %v258, %v255
    %v262 = vadd.f32 %v246, %v261
    %v263 = vsel %vm247, %v248, %v262
    %v264 = vsel %vm244, %v245, %v263
    %265 = vst [vmem:[#allocation8] sm:$0xff] %v264
    // Predicated region
    $region34: #{tpu_custom_call.1} parent=1 // pred_check
      _
    $region35: #{tpu_custom_call.1} parent=1 // pred_check_branch
      %267 = sbr.rel (0) target = $region37
    $region36: #{tpu_custom_call.1} parent=1 // pred_region
      %s269 = ssub.s32 128, 128
      %270 = vsyncadd [#allocation4], %s269
      %s272 = sshll.u32 [#allocation8], 4
      %s273 = int_to_ptr.vmem [resolvable:$true] %s272
      %275 = dma.vmem_to_hbm [thread:$0]  %s273, 128, %s5, [#allocation4]
    $region37: #{tpu_custom_call.1} parent=1 // pred_fallthru
      _
    // Predicated region
    $region38: #{tpu_custom_call.1} parent=1 // pred_check
      _
    $region39: #{tpu_custom_call.1} parent=1 // pred_check_branch
      %277 = sbr.rel (0) target = $region41
    $region40: #{tpu_custom_call.1} parent=1 // pred_region
      %278 = dma.done [#allocation4], 128
    $region41: #{tpu_custom_call.1} parent=1 // pred_fallthru
      _
    %279 = vsyncpa [#allocation3], 1
    %280 = vsyncpa [#allocation6], 1
    %281 = vsyncpa [#allocation4], 1

</llo_original>
